<compile_context>
chip_gen: v7x
topology: tpu7x:2x2x1
jax: 0.10.0
libtpu: 0.0.40
codegen_flags: <defaults>
</compile_context>

<pallas_src>
import jax
import jax.numpy as jnp
from jax.experimental import pallas as pl
from jax.experimental.pallas import tpu as pltpu


def bayesian_linear_kernel(x_ref, wmu_ref, wlv_ref, weps_ref,
                           bmu_ref, blv_ref, beps_ref, o_ref, acc_ref):
    k = pl.program_id(2)

    @pl.when(k == 0)
    def _init():
        acc_ref[...] = jnp.zeros_like(acc_ref)

    # Reparameterize this (tk, tn) weight tile (VPU + EUP), then feed the MXU
    # in bf16 with an f32 accumulator.
    w = (weps_ref[...] * jnp.exp(0.5 * wlv_ref[...]) + wmu_ref[...]).astype(jnp.bfloat16)
    acc_ref[...] += jnp.dot(x_ref[...].astype(jnp.bfloat16), w,
                            preferred_element_type=jnp.float32)

    @pl.when(k == pl.num_programs(2) - 1)
    def _finalize():
        bias = beps_ref[...] * jnp.exp(0.5 * blv_ref[...]) + bmu_ref[...]
        o_ref[...] = (acc_ref[...] + bias).astype(o_ref.dtype)


def _round_up(v, m):
    return (v + m - 1) // m * m


def bayesian_linear(x, weight_mu, weight_log_var, weight_eps,
                    bias_mu, bias_log_var, bias_eps,
                    *, tm=256, tk=512, tn=512):
    """x: [B, dim_in]; weight_*: [dim_in, dim_out]; bias_*: [dim_out]."""
    B, dim_in = x.shape
    dim_out = weight_mu.shape[1]
    out_dtype = x.dtype

    # Clamp tile sizes to the (8,128)-rounded problem extents.
    tm = min(tm, _round_up(B, 8))
    tk = min(tk, _round_up(dim_in, 128))
    tn = min(tn, _round_up(dim_out, 128))

    Bp = _round_up(B, tm)
    Kp = _round_up(dim_in, tk)
    Np = _round_up(dim_out, tn)

    # Zero padding is exact for this op: exp(0.5*0)=1 times eps=0 plus mu=0
    # gives 0 in the padded weight/bias region, and padded x columns are 0.
    def pad2(a, rows, cols):
        return jnp.pad(a, ((0, rows - a.shape[0]), (0, cols - a.shape[1])))

    xp = pad2(x, Bp, Kp)
    wmu = pad2(weight_mu, Kp, Np)
    wlv = pad2(weight_log_var, Kp, Np)
    weps = pad2(weight_eps, Kp, Np)
    bmu = pad2(bias_mu.reshape(1, dim_out), 1, Np)
    blv = pad2(bias_log_var.reshape(1, dim_out), 1, Np)
    beps = pad2(bias_eps.reshape(1, dim_out), 1, Np)

    grid = (Bp // tm, Np // tn, Kp // tk)

    x_spec = pl.BlockSpec((tm, tk), lambda i, j, k: (i, k))
    w_spec = pl.BlockSpec((tk, tn), lambda i, j, k: (k, j))
    b_spec = pl.BlockSpec((1, tn), lambda i, j, k: (0, j))
    o_spec = pl.BlockSpec((tm, tn), lambda i, j, k: (i, j))

    out = pl.pallas_call(
        bayesian_linear_kernel,
        out_shape=jax.ShapeDtypeStruct((Bp, Np), out_dtype),
        grid_spec=pltpu.PrefetchScalarGridSpec(
            num_scalar_prefetch=0,
            grid=grid,
            in_specs=[x_spec, w_spec, w_spec, w_spec, b_spec, b_spec, b_spec],
            out_specs=o_spec,
            scratch_shapes=[pltpu.VMEM((tm, tn), jnp.float32)],
        ),
        compiler_params=pltpu.CompilerParams(
            dimension_semantics=("parallel", "parallel", "arbitrary"),
            vmem_limit_bytes=32 * 1024 * 1024,
        ),
    )(xp, wmu, wlv, weps, bmu, blv, beps)

    return out[:B, :dim_out]


def _reference(x, wmu, wlv, weps, bmu, blv, beps):
    w = weps * jnp.exp(0.5 * wlv) + wmu
    b = beps * jnp.exp(0.5 * blv) + bmu
    return x @ w + b


def _make_inputs(key, batch, dim_in, dim_out):
    k_wmu, k_bmu, k_weps, k_beps, k_x = jax.random.split(key, 5)
    # Mirrors the PyTorch module init:
    #   weight_mu / bias_mu : truncated_normal(stddev=0.1), clipped at +/- 2 std
    #   weight_log_var / bias_log_var : -6 * ones
    wmu = 0.1 * jax.random.truncated_normal(
        k_wmu, -2.0, 2.0, (dim_in, dim_out), dtype=jnp.float32)
    bmu = 0.1 * jax.random.truncated_normal(
        k_bmu, -2.0, 2.0, (dim_out,), dtype=jnp.float32)
    wlv = -6.0 * jnp.ones((dim_in, dim_out), dtype=jnp.float32)
    blv = -6.0 * jnp.ones((dim_out,), dtype=jnp.float32)
    # Reparameterization noise (torch.normal(0, 1)) — deterministic draw here.
    weps = jax.random.normal(k_weps, (dim_in, dim_out), dtype=jnp.float32)
    beps = jax.random.normal(k_beps, (dim_out,), dtype=jnp.float32)
    x = jax.random.normal(k_x, (batch, dim_in), dtype=jnp.float32)
    return x, wmu, wlv, weps, bmu, blv, beps


if __name__ == "__main__":
    key = jax.random.PRNGKey(0)
    k_small, k_big = jax.random.split(key, 2)

    # --- small shape matching the module's test size (8, 32) -> (8, 32) ---
    args = _make_inputs(k_small, batch=8, dim_in=32, dim_out=32)
    out = jax.block_until_ready(bayesian_linear(*args))
    ref = _reference(*args)
    assert out.shape == ref.shape
    # bf16 MXU operands with f32 accumulation -> loosen tolerance vs f32 ref.
    assert jnp.allclose(out, ref, atol=3e-2, rtol=3e-2), (
        f"small-shape mismatch, max abs diff {jnp.max(jnp.abs(out - ref))}")

    # --- a shape that actually exercises the (M, N, K) grid and K-accumulation ---
    args = _make_inputs(k_big, batch=16, dim_in=1024, dim_out=1024)
    out = jax.block_until_ready(
        bayesian_linear(*args, tm=256, tk=512, tn=512))  # grid = (1, 2, 2)
    ref = _reference(*args)
    assert out.shape == ref.shape
    assert jnp.allclose(out, ref, atol=5e-2, rtol=5e-2), (
        f"tiled-shape mismatch, max abs diff {jnp.max(jnp.abs(out - ref))}")

    print("KERNEL_OK")
</pallas_src>

<mosaic_0001>
module attributes {stable_mosaic.version = 11 : i64} {
  func.func @bayesian_linear_kernel(%arg0: i32, %arg1: i32, %arg2: i32, %arg3: memref<8x128xf32, #tpu.memory_space<vmem>>, %arg4: memref<128x128xf32, #tpu.memory_space<vmem>>, %arg5: memref<128x128xf32, #tpu.memory_space<vmem>>, %arg6: memref<128x128xf32, #tpu.memory_space<vmem>>, %arg7: memref<1x128xf32, #tpu.memory_space<vmem>>, %arg8: memref<1x128xf32, #tpu.memory_space<vmem>>, %arg9: memref<1x128xf32, #tpu.memory_space<vmem>>, %arg10: memref<8x128xf32, #tpu.memory_space<vmem>>, %arg11: memref<8x128xf32, #tpu.memory_space<vmem>>) attributes {dimension_semantics = [#tpu.dimension_semantics<parallel>, #tpu.dimension_semantics<parallel>, #tpu.dimension_semantics<arbitrary>], iteration_bounds = array<i64: 1, 1, 1>, scalar_prefetch = 0 : i64, scratch_operands = 1 : i64, tpu.core_type = #tpu.core_type<tc>, window_params = [{transform_indices = @transform_0, window_bounds = array<i64: 8, 128>}, {transform_indices = @transform_1, window_bounds = array<i64: 128, 128>}, {transform_indices = @transform_2, window_bounds = array<i64: 128, 128>}, {transform_indices = @transform_3, window_bounds = array<i64: 128, 128>}, {transform_indices = @transform_4, window_bounds = array<i64: 1, 128>}, {transform_indices = @transform_5, window_bounds = array<i64: 1, 128>}, {transform_indices = @transform_6, window_bounds = array<i64: 1, 128>}, {transform_indices = @transform_7, window_bounds = array<i64: 8, 128>}]} {
    %c0_i32 = arith.constant 0 : i32
    %0 = arith.cmpi eq, %arg2, %c0_i32 : i32
    %1 = arith.extui %0 : i1 to i32
    %c0_i32_0 = arith.constant 0 : i32
    %2 = arith.cmpi ne, %1, %c0_i32_0 : i32
    scf.if %2 {
      %cst_15 = arith.constant 0.000000e+00 : f32
      %21 = vector.broadcast %cst_15 : f32 to vector<8x128xf32>
      %c0_16 = arith.constant 0 : index
      %c0_17 = arith.constant 0 : index
      %22 = vector.load %arg11[%c0_16, %c0_17] : memref<8x128xf32, #tpu.memory_space<vmem>>, vector<8x128xf32>
      tpu.vector_store %arg11[%c0_16, %c0_17], %21 {strides = array<i32>} : memref<8x128xf32, #tpu.memory_space<vmem>>, vector<8x128xf32>,
    } else {
    }
    %c0 = arith.constant 0 : index
    %c0_1 = arith.constant 0 : index
    %3 = vector.load %arg6[%c0, %c0_1] : memref<128x128xf32, #tpu.memory_space<vmem>>, vector<128x128xf32>
    %c0_2 = arith.constant 0 : index
    %c0_3 = arith.constant 0 : index
    %4 = vector.load %arg5[%c0_2, %c0_3] : memref<128x128xf32, #tpu.memory_space<vmem>>, vector<128x128xf32>
    %cst = arith.constant 5.000000e-01 : f32
    %5 = vector.broadcast %cst : f32 to vector<128x128xf32>
    %6 = arith.mulf %5, %4 : vector<128x128xf32>
    %7 = math.exp %6 : vector<128x128xf32>
    %8 = arith.mulf %3, %7 : vector<128x128xf32>
    %c0_4 = arith.constant 0 : index
    %c0_5 = arith.constant 0 : index
    %9 = vector.load %arg4[%c0_4, %c0_5] : memref<128x128xf32, #tpu.memory_space<vmem>>, vector<128x128xf32>
    %10 = arith.addf %8, %9 : vector<128x128xf32>
    %11 = arith.truncf %10 : vector<128x128xf32> to vector<128x128xbf16>
    %c0_6 = arith.constant 0 : index
    %c0_7 = arith.constant 0 : index
    %12 = vector.load %arg11[%c0_6, %c0_7] : memref<8x128xf32, #tpu.memory_space<vmem>>, vector<8x128xf32>
    %c0_8 = arith.constant 0 : index
    %c0_9 = arith.constant 0 : index
    %13 = vector.load %arg3[%c0_8, %c0_9] : memref<8x128xf32, #tpu.memory_space<vmem>>, vector<8x128xf32>
    %14 = arith.truncf %13 : vector<8x128xf32> to vector<8x128xbf16>
    %cst_10 = arith.constant dense<0.000000e+00> : vector<8x128xf32>
    %15 = tpu.matmul %14, %11, %cst_10 {dimension_numbers = #tpu.dot_dimension_numbers<[1], [0], [0], [1], [0, 0, 1, 1], [], []>} : vector<8x128xbf16>, vector<128x128xbf16>, vector<8x128xf32> -> vector<8x128xf32>
    %16 = arith.addf %12, %15 : vector<8x128xf32>
    %c0_11 = arith.constant 0 : index
    %c0_12 = arith.constant 0 : index
    %17 = vector.load %arg11[%c0_11, %c0_12] : memref<8x128xf32, #tpu.memory_space<vmem>>, vector<8x128xf32>
    tpu.vector_store %arg11[%c0_11, %c0_12], %16 {strides = array<i32>} : memref<8x128xf32, #tpu.memory_space<vmem>>, vector<8x128xf32>,
    %c0_i32_13 = arith.constant 0 : i32
    %18 = arith.cmpi eq, %arg2, %c0_i32_13 : i32
    %19 = arith.extui %18 : i1 to i32
    %c0_i32_14 = arith.constant 0 : i32
    %20 = arith.cmpi ne, %19, %c0_i32_14 : i32
    scf.if %20 {
      %c0_15 = arith.constant 0 : index
      %c0_16 = arith.constant 0 : index
      %21 = vector.load %arg9[%c0_15, %c0_16] : memref<1x128xf32, #tpu.memory_space<vmem>>, vector<1x128xf32>
      %c0_17 = arith.constant 0 : index
      %c0_18 = arith.constant 0 : index
      %22 = vector.load %arg8[%c0_17, %c0_18] : memref<1x128xf32, #tpu.memory_space<vmem>>, vector<1x128xf32>
      %cst_19 = arith.constant 5.000000e-01 : f32
      %23 = vector.broadcast %cst_19 : f32 to vector<1x128xf32>
      %24 = arith.mulf %23, %22 : vector<1x128xf32>
      %25 = math.exp %24 : vector<1x128xf32>
      %26 = arith.mulf %21, %25 : vector<1x128xf32>
      %c0_20 = arith.constant 0 : index
      %c0_21 = arith.constant 0 : index
      %27 = vector.load %arg7[%c0_20, %c0_21] : memref<1x128xf32, #tpu.memory_space<vmem>>, vector<1x128xf32>
      %28 = arith.addf %26, %27 : vector<1x128xf32>
      %c0_22 = arith.constant 0 : index
      %c0_23 = arith.constant 0 : index
      %29 = vector.load %arg11[%c0_22, %c0_23] : memref<8x128xf32, #tpu.memory_space<vmem>>, vector<8x128xf32>
      %30 = vector.broadcast %28 : vector<1x128xf32> to vector<8x128xf32>
      %31 = arith.addf %29, %30 : vector<8x128xf32>
      %c0_24 = arith.constant 0 : index
      %c0_25 = arith.constant 0 : index
      %32 = vector.load %arg10[%c0_24, %c0_25] : memref<8x128xf32, #tpu.memory_space<vmem>>, vector<8x128xf32>
      tpu.vector_store %arg10[%c0_24, %c0_25], %31 {strides = array<i32>} : memref<8x128xf32, #tpu.memory_space<vmem>>, vector<8x128xf32>,
    } else {
    }
    return
  }
  func.func @transform_0(%arg0: i32, %arg1: i32, %arg2: i32) -> (i32, i32) {
    %c0_i32 = arith.constant 0 : i32
    return %arg0, %arg2 : i32, i32
  }
  func.func @transform_1(%arg0: i32, %arg1: i32, %arg2: i32) -> (i32, i32) {
    %c0_i32 = arith.constant 0 : i32
    return %arg2, %arg1 : i32, i32
  }
  func.func @transform_2(%arg0: i32, %arg1: i32, %arg2: i32) -> (i32, i32) {
    %c0_i32 = arith.constant 0 : i32
    return %arg2, %arg1 : i32, i32
  }
  func.func @transform_3(%arg0: i32, %arg1: i32, %arg2: i32) -> (i32, i32) {
    %c0_i32 = arith.constant 0 : i32
    return %arg2, %arg1 : i32, i32
  }
  func.func @transform_4(%arg0: i32, %arg1: i32, %arg2: i32) -> (i32, i32) {
    %c0_i32 = arith.constant 0 : i32
    %c0_i32_0 = arith.constant 0 : i32
    return %c0_i32, %arg1 : i32, i32
  }
  func.func @transform_5(%arg0: i32, %arg1: i32, %arg2: i32) -> (i32, i32) {
    %c0_i32 = arith.constant 0 : i32
    %c0_i32_0 = arith.constant 0 : i32
    return %c0_i32, %arg1 : i32, i32
  }
  func.func @transform_6(%arg0: i32, %arg1: i32, %arg2: i32) -> (i32, i32) {
    %c0_i32 = arith.constant 0 : i32
    %c0_i32_0 = arith.constant 0 : i32
    return %c0_i32, %arg1 : i32, i32
  }
  func.func @transform_7(%arg0: i32, %arg1: i32, %arg2: i32) -> (i32, i32) {
    %c0_i32 = arith.constant 0 : i32
    return %arg0, %arg1 : i32, i32
  }
}

</mosaic_0001>

<llo_original>
// kernel: tpu_custom_call.1
$region0: #{tpu_custom_call.1}
  #allocation0 [shape = 'u32[]', space=smem, size = 0x4, offset = 0x4, fixed_abs, tag = 'smem constant byte address 0x4 - core index']
  #allocation1 [shape = 'u32[144,128]{1,0:T(1,128)}', space=vmem, size = 0x12000, scoped, tag = 'internal scratch']
  #allocation2 [shape = 'f32[8,128]{1,0:T(8,128)}', space=vmem, size = 0x1000, scoped, tag = 'scratch operand']
  %s0 = inlined_call_operand.hbm [shape: f32[8,128], index: 0, kind: input, shape index: {}]
  %s1 = inlined_call_operand.hbm [shape: f32[128,128], index: 1, kind: input, shape index: {}]
  %s2 = inlined_call_operand.hbm [shape: f32[128,128], index: 2, kind: input, shape index: {}]
  %s3 = inlined_call_operand.hbm [shape: f32[128,128], index: 3, kind: input, shape index: {}]
  %s4 = inlined_call_operand.vmem [shape: f32[1,128], index: 4, kind: input, shape index: {}]
  %s5 = inlined_call_operand.vmem [shape: f32[1,128], index: 5, kind: input, shape index: {}]
  %s6 = inlined_call_operand.vmem [shape: f32[1,128], index: 6, kind: input, shape index: {}]
  %s7 = inlined_call_operand.hbm [shape: f32[8,128], index: 7, kind: output, shape index: {}]
  %s8 = sld [smem:[#allocation0]]
  $region62: #{tpu_custom_call.1} parent=0
    _
  %s10 = ssub.s32 1, %s8
  %s11 = scalar_select 0, %s10, %s8
  $region1: #{tpu_custom_call.1} parent=0
    #allocation3 [shape = 'u8[4096]{0}', space=vmem, size = 0x1000, scoped, tag = 'input window, operand 0, single buffered']
    #allocation4 [shape = 's32[1]{0}', space=sflag, size = 0x4, scoped, tag = 'scoped memory for tpu_custom_call.1']
    #allocation5 [shape = 's32[1]{0}', space=sflag, size = 0x4, scoped, tag = 'scoped memory for tpu_custom_call.1']
    #allocation6 [shape = 'u8[65536]{0}', space=vmem, size = 0x10000, scoped, tag = 'input window, operand 1, single buffered']
    #allocation7 [shape = 's32[1]{0}', space=sflag, size = 0x4, scoped, tag = 'scoped memory for tpu_custom_call.1']
    #allocation8 [shape = 'u8[65536]{0}', space=vmem, size = 0x10000, scoped, tag = 'input window, operand 2, single buffered']
    #allocation9 [shape = 'u8[65536]{0}', space=vmem, size = 0x10000, scoped, tag = 'input window, operand 3, single buffered']
    #allocation10 [shape = 's32[1]{0}', space=sflag, size = 0x4, scoped, tag = 'scoped memory for tpu_custom_call.1']
    #allocation11 [shape = 'u8[4096]{0}', space=vmem, size = 0x1000, scoped, tag = 'output window, operand 0, single buffered']
    %12 = vsyncpa [#allocation4], 0
    %13 = vsyncpa [#allocation7], 0
    %14 = vsyncpa [#allocation10], 0
    %15 = vsyncpa [#allocation5], 0
    // Predicated region
    $region2: #{tpu_custom_call.1} parent=1 // pred_check
      _
    $region3: #{tpu_custom_call.1} parent=1 // pred_check_branch
      %17 = sbr.rel (0) target = $region5
    $region4: #{tpu_custom_call.1} parent=1 // pred_region
      %s19 = ssub.s32 128, 128
      %20 = vsyncadd [#allocation4], %s19
      %s22 = sshll.u32 [#allocation3], 4
      %s23 = int_to_ptr.vmem [resolvable:$true] %s22
      %25 = dma.hbm_to_vmem [thread:$0]  %s0, 128, %s23, [#allocation4]
    $region5: #{tpu_custom_call.1} parent=1 // pred_fallthru
      _
    // Predicated region
    $region6: #{tpu_custom_call.1} parent=1 // pred_check
      _
    $region7: #{tpu_custom_call.1} parent=1 // pred_check_branch
      %27 = sbr.rel (0) target = $region9
    $region8: #{tpu_custom_call.1} parent=1 // pred_region
      %s29 = ssub.s32 2048, 2048
      %30 = vsyncadd [#allocation7], %s29
      %s31 = sshll.u32 [#allocation6], 4
      %s32 = int_to_ptr.vmem [resolvable:$true] %s31
      %37 = dma.hbm_to_vmem [thread:$0]  %s1, 2048, %s32, [#allocation7], 128, 128, 8
    $region9: #{tpu_custom_call.1} parent=1 // pred_fallthru
      _
    // Predicated region
    $region10: #{tpu_custom_call.1} parent=1 // pred_check
      _
    $region11: #{tpu_custom_call.1} parent=1 // pred_check_branch
      %39 = sbr.rel (0) target = $region13
    $region12: #{tpu_custom_call.1} parent=1 // pred_region
      %s41 = ssub.s32 2048, 2048
      %42 = vsyncadd [#allocation7], %s41
      %s43 = sshll.u32 [#allocation8], 4
      %s44 = int_to_ptr.vmem [resolvable:$true] %s43
      %49 = dma.hbm_to_vmem [thread:$0]  %s2, 2048, %s44, [#allocation7], 128, 128, 8
    $region13: #{tpu_custom_call.1} parent=1 // pred_fallthru
      _
    // Predicated region
    $region14: #{tpu_custom_call.1} parent=1 // pred_check
      _
    $region15: #{tpu_custom_call.1} parent=1 // pred_check_branch
      %51 = sbr.rel (0) target = $region17
    $region16: #{tpu_custom_call.1} parent=1 // pred_region
      %s53 = ssub.s32 2048, 2048
      %54 = vsyncadd [#allocation10], %s53
      %s55 = sshll.u32 [#allocation9], 4
      %s56 = int_to_ptr.vmem [resolvable:$true] %s55
      %61 = dma.hbm_to_vmem [thread:$0]  %s3, 2048, %s56, [#allocation10], 128, 128, 8
    $region17: #{tpu_custom_call.1} parent=1 // pred_fallthru
      _
    // Predicated region
    $region18: #{tpu_custom_call.1} parent=1 // pred_check
      _
    $region19: #{tpu_custom_call.1} parent=1 // pred_check_branch
      %63 = sbr.rel (0) target = $region21
    $region20: #{tpu_custom_call.1} parent=1 // pred_region
      _
    $region21: #{tpu_custom_call.1} parent=1 // pred_fallthru
      _
    // Predicated region
    $region22: #{tpu_custom_call.1} parent=1 // pred_check
      _
    $region23: #{tpu_custom_call.1} parent=1 // pred_check_branch
      %65 = sbr.rel (0) target = $region25
    $region24: #{tpu_custom_call.1} parent=1 // pred_region
      _
    $region25: #{tpu_custom_call.1} parent=1 // pred_fallthru
      _
    // Predicated region
    $region26: #{tpu_custom_call.1} parent=1 // pred_check
      _
    $region27: #{tpu_custom_call.1} parent=1 // pred_check_branch
      %67 = sbr.rel (0) target = $region29
    $region28: #{tpu_custom_call.1} parent=1 // pred_region
      _
    $region29: #{tpu_custom_call.1} parent=1 // pred_fallthru
      _
    // Predicated region
    $region30: #{tpu_custom_call.1} parent=1 // pred_check
      _
    $region31: #{tpu_custom_call.1} parent=1 // pred_check_branch
      %69 = sbr.rel (0) target = $region33
    $region32: #{tpu_custom_call.1} parent=1 // pred_region
      %70 = dma.done [#allocation4], 128
    $region33: #{tpu_custom_call.1} parent=1 // pred_fallthru
      _
    // Predicated region
    $region34: #{tpu_custom_call.1} parent=1 // pred_check
      _
    $region35: #{tpu_custom_call.1} parent=1 // pred_check_branch
      %72 = sbr.rel (0) target = $region37
    $region36: #{tpu_custom_call.1} parent=1 // pred_region
      %73 = dma.done [#allocation7], 2048
    $region37: #{tpu_custom_call.1} parent=1 // pred_fallthru
      _
    // Predicated region
    $region38: #{tpu_custom_call.1} parent=1 // pred_check
      _
    $region39: #{tpu_custom_call.1} parent=1 // pred_check_branch
      %75 = sbr.rel (0) target = $region41
    $region40: #{tpu_custom_call.1} parent=1 // pred_region
      %76 = dma.done [#allocation7], 2048
    $region41: #{tpu_custom_call.1} parent=1 // pred_fallthru
      _
    // Predicated region
    $region42: #{tpu_custom_call.1} parent=1 // pred_check
      _
    $region43: #{tpu_custom_call.1} parent=1 // pred_check_branch
      %78 = sbr.rel (0) target = $region45
    $region44: #{tpu_custom_call.1} parent=1 // pred_region
      %79 = dma.done [#allocation10], 2048
    $region45: #{tpu_custom_call.1} parent=1 // pred_fallthru
      _
    %p81 = scmp.eq.s32.totalorder 0, 0
    // Predicated region
    $region46: #{tpu_custom_call.1} parent=1 // pred_check
      %p82 = pneg %p81
    $region47: #{tpu_custom_call.1} parent=1 // pred_check_branch
      %84 = sbr.rel (%p82) target = $region49
    $region48: #{tpu_custom_call.1} parent=1 // pred_region
      %85 = vst [vmem:[#allocation2] sm:$0xff] 0.0
    $region49: #{tpu_custom_call.1} parent=1 // pred_fallthru
      _
    %v86 = vld [vmem:[#allocation9] sm:$0xff]
    %v87 = vld [vmem:[#allocation9 + $0x8] sm:$0xff]
    %v88 = vld [vmem:[#allocation9 + $0x10] sm:$0xff]
    %v89 = vld [vmem:[#allocation9 + $0x18] sm:$0xff]
    %v90 = vld [vmem:[#allocation9 + $0x20] sm:$0xff]
    %v91 = vld [vmem:[#allocation9 + $0x28] sm:$0xff]
    %v92 = vld [vmem:[#allocation9 + $0x30] sm:$0xff]
    %v93 = vld [vmem:[#allocation9 + $0x38] sm:$0xff]
    %v94 = vld [vmem:[#allocation9 + $0x40] sm:$0xff]
    %v95 = vld [vmem:[#allocation9 + $0x48] sm:$0xff]
    %v96 = vld [vmem:[#allocation9 + $0x50] sm:$0xff]
    %v97 = vld [vmem:[#allocation9 + $0x58] sm:$0xff]
    %v98 = vld [vmem:[#allocation9 + $0x60] sm:$0xff]
    %v99 = vld [vmem:[#allocation9 + $0x68] sm:$0xff]
    %v100 = vld [vmem:[#allocation9 + $0x70] sm:$0xff]
    %v101 = vld [vmem:[#allocation9 + $0x78] sm:$0xff]
    %v102 = vld [vmem:[#allocation8] sm:$0xff]
    %v103 = vld [vmem:[#allocation8 + $0x8] sm:$0xff]
    %v104 = vld [vmem:[#allocation8 + $0x10] sm:$0xff]
    %v105 = vld [vmem:[#allocation8 + $0x18] sm:$0xff]
    %v106 = vld [vmem:[#allocation8 + $0x20] sm:$0xff]
    %v107 = vld [vmem:[#allocation8 + $0x28] sm:$0xff]
    %v108 = vld [vmem:[#allocation8 + $0x30] sm:$0xff]
    %v109 = vld [vmem:[#allocation8 + $0x38] sm:$0xff]
    %v110 = vld [vmem:[#allocation8 + $0x40] sm:$0xff]
    %v111 = vld [vmem:[#allocation8 + $0x48] sm:$0xff]
    %v112 = vld [vmem:[#allocation8 + $0x50] sm:$0xff]
    %v113 = vld [vmem:[#allocation8 + $0x58] sm:$0xff]
    %v114 = vld [vmem:[#allocation8 + $0x60] sm:$0xff]
    %v115 = vld [vmem:[#allocation8 + $0x68] sm:$0xff]
    %v116 = vld [vmem:[#allocation8 + $0x70] sm:$0xff]
    %v117 = vld [vmem:[#allocation8 + $0x78] sm:$0xff]
    %v118 = vmul.f32 %v102, 0.5
    %v119 = vmul.f32 %v103, 0.5
    %v120 = vmul.f32 %v104, 0.5
    %v121 = vmul.f32 %v105, 0.5
    %v122 = vmul.f32 %v106, 0.5
    %v123 = vmul.f32 %v107, 0.5
    %v124 = vmul.f32 %v108, 0.5
    %v125 = vmul.f32 %v109, 0.5
    %v126 = vmul.f32 %v110, 0.5
    %v127 = vmul.f32 %v111, 0.5
    %v128 = vmul.f32 %v112, 0.5
    %v129 = vmul.f32 %v113, 0.5
    %v130 = vmul.f32 %v114, 0.5
    %v131 = vmul.f32 %v115, 0.5
    %v132 = vmul.f32 %v116, 0.5
    %v133 = vmul.f32 %v117, 0.5
    %v134 = vmul.f32 %v118, 1.442695
    %v135 = vpow.pop %v134
    %v136 = vmul.f32 %v119, 1.442695
    %v137 = vpow.pop %v136
    %v138 = vmul.f32 %v120, 1.442695
    %v139 = vpow.pop %v138
    %v140 = vmul.f32 %v121, 1.442695
    %v141 = vpow.pop %v140
    %v142 = vmul.f32 %v122, 1.442695
    %v143 = vpow.pop %v142
    %v144 = vmul.f32 %v123, 1.442695
    %v145 = vpow.pop %v144
    %v146 = vmul.f32 %v124, 1.442695
    %v147 = vpow.pop %v146
    %v148 = vmul.f32 %v125, 1.442695
    %v149 = vpow.pop %v148
    %v150 = vmul.f32 %v126, 1.442695
    %v151 = vpow.pop %v150
    %v152 = vmul.f32 %v127, 1.442695
    %v153 = vpow.pop %v152
    %v154 = vmul.f32 %v128, 1.442695
    %v155 = vpow.pop %v154
    %v156 = vmul.f32 %v129, 1.442695
    %v157 = vpow.pop %v156
    %v158 = vmul.f32 %v130, 1.442695
    %v159 = vpow.pop %v158
    %v160 = vmul.f32 %v131, 1.442695
    %v161 = vpow.pop %v160
    %v162 = vmul.f32 %v132, 1.442695
    %v163 = vpow.pop %v162
    %v164 = vmul.f32 %v133, 1.442695
    %v165 = vpow.pop %v164
    %v166 = vmul.f32 %v86, %v135
    %v167 = vmul.f32 %v87, %v137
    %v168 = vmul.f32 %v88, %v139
    %v169 = vmul.f32 %v89, %v141
    %v170 = vmul.f32 %v90, %v143
    %v171 = vmul.f32 %v91, %v145
    %v172 = vmul.f32 %v92, %v147
    %v173 = vmul.f32 %v93, %v149
    %v174 = vmul.f32 %v94, %v151
    %v175 = vmul.f32 %v95, %v153
    %v176 = vmul.f32 %v96, %v155
    %v177 = vmul.f32 %v97, %v157
    %v178 = vmul.f32 %v98, %v159
    %v179 = vmul.f32 %v99, %v161
    %v180 = vmul.f32 %v100, %v163
    %v181 = vmul.f32 %v101, %v165
    %v182 = vld [vmem:[#allocation6] sm:$0xff]
    %v183 = vld [vmem:[#allocation6 + $0x8] sm:$0xff]
    %v184 = vld [vmem:[#allocation6 + $0x10] sm:$0xff]
    %v185 = vld [vmem:[#allocation6 + $0x18] sm:$0xff]
    %v186 = vld [vmem:[#allocation6 + $0x20] sm:$0xff]
    %v187 = vld [vmem:[#allocation6 + $0x28] sm:$0xff]
    %v188 = vld [vmem:[#allocation6 + $0x30] sm:$0xff]
    %v189 = vld [vmem:[#allocation6 + $0x38] sm:$0xff]
    %v190 = vld [vmem:[#allocation6 + $0x40] sm:$0xff]
    %v191 = vld [vmem:[#allocation6 + $0x48] sm:$0xff]
    %v192 = vld [vmem:[#allocation6 + $0x50] sm:$0xff]
    %v193 = vld [vmem:[#allocation6 + $0x58] sm:$0xff]
    %v194 = vld [vmem:[#allocation6 + $0x60] sm:$0xff]
    %v195 = vld [vmem:[#allocation6 + $0x68] sm:$0xff]
    %v196 = vld [vmem:[#allocation6 + $0x70] sm:$0xff]
    %v197 = vld [vmem:[#allocation6 + $0x78] sm:$0xff]
    %v198 = vadd.f32 %v166, %v182
    %v199 = vadd.f32 %v167, %v183
    %v200 = vadd.f32 %v168, %v184
    %v201 = vadd.f32 %v169, %v185
    %v202 = vadd.f32 %v170, %v186
    %v203 = vadd.f32 %v171, %v187
    %v204 = vadd.f32 %v172, %v188
    %v205 = vadd.f32 %v173, %v189
    %v206 = vadd.f32 %v174, %v190
    %v207 = vadd.f32 %v175, %v191
    %v208 = vadd.f32 %v176, %v192
    %v209 = vadd.f32 %v177, %v193
    %v210 = vadd.f32 %v178, %v194
    %v211 = vadd.f32 %v179, %v195
    %v212 = vadd.f32 %v180, %v196
    %v213 = vadd.f32 %v181, %v197
    %v214 = vpack.c.bf16 %v199, %v198
    %v215 = vpack.c.bf16 %v201, %v200
    %v216 = vpack.c.bf16 %v203, %v202
    %v217 = vpack.c.bf16 %v205, %v204
    %v218 = vpack.c.bf16 %v207, %v206
    %v219 = vpack.c.bf16 %v209, %v208
    %v220 = vpack.c.bf16 %v211, %v210
    %v221 = vpack.c.bf16 %v213, %v212
    %v222 = vld [vmem:[#allocation2] sm:$0xff]
    %v223 = vld [vmem:[#allocation3] sm:$0xff]
    %v224 = vpack.c.bf16 %v223, %v223
    %225 = vmatprep.subr.bf16.mxu0 0
    %226 = vmatpush1.bf16.msra.mxu0 %v214
    %227 = vmatprep.subr.bf16.mxu0 0
    %228 = vmatpush1.bf16.msra.mxu0 %v215
    %229 = vmatprep.subr.bf16.mxu0 0
    %230 = vmatpush1.bf16.msra.mxu0 %v216
    %231 = vmatprep.subr.bf16.mxu0 0
    %232 = vmatpush1.bf16.msra.mxu0 %v217
    %233 = vmatprep.subr.bf16.mxu0 0
    %234 = vmatpush1.bf16.msra.mxu0 %v218
    %235 = vmatprep.subr.bf16.mxu0 0
    %236 = vmatpush1.bf16.msra.mxu0 %v219
    %237 = vmatprep.subr.bf16.mxu0 0
    %238 = vmatpush1.bf16.msra.mxu0 %v220
    %239 = vmatprep.subr.bf16.mxu0 0
    %240 = vmatpush1.bf16.msra.mxu0 %v221
    %241 = vmatprep.subr.bf16.mxu0 0
    %242 = vmatpush1.bf16.msra.mxu0 0
    %243 = vmatprep.subr.bf16.mxu0 0
    %244 = vmatpush1.bf16.msra.mxu0 0
    %245 = vmatprep.subr.bf16.mxu0 0
    %246 = vmatpush1.bf16.msra.mxu0 0
    %247 = vmatprep.subr.bf16.mxu0 0
    %248 = vmatpush1.bf16.msra.mxu0 0
    %249 = vmatprep.subr.bf16.mxu0 0
    %250 = vmatpush1.bf16.msra.mxu0 0
    %251 = vmatprep.subr.bf16.mxu0 0
    %252 = vmatpush1.bf16.msra.mxu0 0
    %253 = vmatprep.subr.bf16.mxu0 0
    %254 = vmatpush1.bf16.msra.mxu0 0
    %255 = vmatprep.subr.bf16.mxu0 0
    %256 = vmatpush1.bf16.msra.mxu0 0
    %257 = vmatprep.mubr.bf16.mxu0 0
    %258 = vmatmul.mubr.bf16.gmra.mrb[0].mxu0 %v224
    %v259 = vpop.f32.mrb[0].mxu0
    %v260 = vadd.f32 0.0, %v259
    %v261 = vpop.f32.mrb[0].mxu0
    %v262 = vpop.f32.mrb[0].mxu0
    %v263 = vpop.f32.mrb[0].mxu0
    %264 = vdwg.mxu0
    %v265 = vadd.f32 %v222, %v260
    %266 = vst [vmem:[#allocation2] sm:$0xff] %v265
    // Predicated region
    $region50: #{tpu_custom_call.1} parent=1 // pred_check
      %p267 = pneg %p81
    $region51: #{tpu_custom_call.1} parent=1 // pred_check_branch
      %269 = sbr.rel (%p267) target = $region53
    $region52: #{tpu_custom_call.1} parent=1 // pred_region
      %v270 = vld [vmem:[%s6] sm:$0x1]
      %v271 = vld [vmem:[%s5] sm:$0x1]
      %v272 = vmul.f32 %v271, 0.5
      %v273 = vmul.f32 %v272, 1.442695
      %v274 = vpow.pop %v273
      %v275 = vmul.f32 %v270, %v274
      %v276 = vld [vmem:[%s4] sm:$0x1]
      %v277 = vadd.f32 %v275, %v276
      %v278 = vld [vmem:[#allocation2] sm:$0xff]
      %v280 = vlaneseq
      %v281 = vshrl.u32 %v280, 7
      %v282 = vsub.s32 0, %v281
      %v283 = vrot.slane %v277, %v282
      %v285 = vadd.f32 %v278, %v283
      %286 = vst [vmem:[#allocation11] sm:$0xff] %v285
    $region53: #{tpu_custom_call.1} parent=1 // pred_fallthru
      _
    // Predicated region
    $region54: #{tpu_custom_call.1} parent=1 // pred_check
      _
    $region55: #{tpu_custom_call.1} parent=1 // pred_check_branch
      %288 = sbr.rel (0) target = $region57
    $region56: #{tpu_custom_call.1} parent=1 // pred_region
      %s290 = ssub.s32 128, 128
      %291 = vsyncadd [#allocation5], %s290
      %s293 = sshll.u32 [#allocation11], 4
      %s294 = int_to_ptr.vmem [resolvable:$true] %s293
      %296 = dma.vmem_to_hbm [thread:$0]  %s294, 128, %s7, [#allocation5]
    $region57: #{tpu_custom_call.1} parent=1 // pred_fallthru
      _
    // Predicated region
    $region58: #{tpu_custom_call.1} parent=1 // pred_check
      _
    $region59: #{tpu_custom_call.1} parent=1 // pred_check_branch
      %298 = sbr.rel (0) target = $region61
    $region60: #{tpu_custom_call.1} parent=1 // pred_region
      %299 = dma.done [#allocation5], 128
    $region61: #{tpu_custom_call.1} parent=1 // pred_fallthru
      _
    %300 = vsyncpa [#allocation4], 1
    %301 = vsyncpa [#allocation7], 1
    %302 = vsyncpa [#allocation10], 1
    %303 = vsyncpa [#allocation5], 1

</llo_original>
